<compile_context>
chip_gen: v7x
topology: tpu7x:2x2x1
jax: 0.10.0
libtpu: 0.0.40
codegen_flags: <defaults>
</compile_context>

<pallas_src>
from typing import Optional, Tuple, Union

import jax
import jax.numpy as jnp
from jax.experimental import pallas as pl
from jax.experimental.pallas import tpu as pltpu


# ----------------------------------------------------------------------------
# Glue: size resolution (mirrors kornia's _side_to_image_size) and
# interpolation-weight construction (PyTorch bilinear semantics).
# ----------------------------------------------------------------------------
def _side_to_image_size(side_size: int, aspect_ratio: float, side: str = "short") -> Tuple[int, int]:
    if side not in ("short", "long", "vert", "horz"):
        raise ValueError(f"side can be one of 'short', 'long', 'vert', and 'horz'. Got '{side}'")
    if side == "vert":
        return (side_size, int(side_size * aspect_ratio))
    elif side == "horz":
        return (int(side_size / aspect_ratio), side_size)
    elif (side == "short") ^ (aspect_ratio < 1.0):
        return (side_size, int(side_size * aspect_ratio))
    else:
        return (int(side_size / aspect_ratio), side_size)


def _bilinear_weight_matrix(out_size: int, in_size: int, align_corners: bool) -> jnp.ndarray:
    """Dense (out_size, in_size) 1-D bilinear interpolation matrix (PyTorch semantics)."""
    dst = jnp.arange(out_size, dtype=jnp.float32)
    if align_corners:
        if out_size == 1:
            src = jnp.zeros_like(dst)
        else:
            scale = (in_size - 1) / (out_size - 1)
            src = dst * scale
    else:
        scale = in_size / out_size
        src = (dst + 0.5) * scale - 0.5
        src = jnp.maximum(src, 0.0)  # PyTorch clamps negative source coords to 0
    i0 = jnp.floor(src).astype(jnp.int32)
    i0 = jnp.clip(i0, 0, in_size - 1)
    i1 = jnp.minimum(i0 + 1, in_size - 1)
    frac = src - i0.astype(jnp.float32)
    w = (1.0 - frac)[:, None] * jax.nn.one_hot(i0, in_size, dtype=jnp.float32) \
        + frac[:, None] * jax.nn.one_hot(i1, in_size, dtype=jnp.float32)
    return w


def _cdiv(a: int, b: int) -> int:
    return -(-a // b)


def _pick_plane_block(n_planes: int, h_in: int, w_in: int, h_out: int, w_pad: int,
                      io_bytes: int, wt_bytes: int, budget_bytes: int) -> Tuple[int, int]:
    """Pick the number of planes P per grid step so the working set fits the VMEM budget."""
    # Double-buffered weights (conservative) + per-plane buffers & f32 temps.
    weight_bytes = 2 * (h_out * h_in + w_in * w_pad) * wt_bytes
    per_plane = (2 * h_in * w_in * io_bytes        # double-buffered input block
                 + 2 * h_out * w_pad * io_bytes    # double-buffered output block
                 + h_in * w_pad * 4                # f32 width-resize intermediate
                 + h_out * w_pad * 4)              # f32 height-resize result
    avail = budget_bytes - weight_bytes
    p_max = 1 if avail < per_plane else int(avail // per_plane)
    p_max = max(1, min(32, n_planes, p_max))
    num_blocks = _cdiv(n_planes, p_max)
    p = _cdiv(n_planes, num_blocks)   # rebalance so padding is at most num_blocks-1 planes
    return p, num_blocks


# ----------------------------------------------------------------------------
# Pallas kernel: P planes per grid step.
#   width resize : one flattened (P*H_in, W_in) @ (W_in, W_pad) MXU matmul
#   height resize: P small (H_out, H_in) @ (H_in, W_pad) matmuls (static unroll)
# ----------------------------------------------------------------------------
def _resize_kernel(wh_ref, wwt_ref, x_ref, o_ref):
    p_planes, h_in, w_in = x_ref.shape
    w_pad = wwt_ref.shape[1]
    cdt = wh_ref.dtype                      # compute dtype (bf16 or f32)
    wh = wh_ref[...]
    wwt = wwt_ref[...]

    if h_in % 8 == 0:
        # Flattened width resize over all P planes at once (big-M MXU matmul).
        x2d = x_ref[...].astype(cdt).reshape(p_planes * h_in, w_in)
        tmp_all = jnp.dot(x2d, wwt, preferred_element_type=jnp.float32)
        tmp_all = tmp_all.reshape(p_planes, h_in, w_pad).astype(cdt)
        for p in range(p_planes):           # static unroll, P <= 32
            o_ref[p] = jnp.dot(wh, tmp_all[p],
                               preferred_element_type=jnp.float32).astype(o_ref.dtype)
    else:
        # H not sublane-aligned: avoid the merge-reshape relayout, go per plane.
        for p in range(p_planes):           # static unroll, P <= 32
            tmp = jnp.dot(x_ref[p].astype(cdt), wwt,
                          preferred_element_type=jnp.float32).astype(cdt)
            o_ref[p] = jnp.dot(wh, tmp,
                               preferred_element_type=jnp.float32).astype(o_ref.dtype)


def _bilinear_resize_pallas(x: jnp.ndarray, out_hw: Tuple[int, int], align_corners: bool) -> jnp.ndarray:
    if not jnp.issubdtype(x.dtype, jnp.floating):
        # TODO(synk): PyTorch F.interpolate(bilinear) is float-only; integer inputs unsupported.
        raise TypeError(f"bilinear resize requires a floating dtype, got {x.dtype}")

    b, c, h_in, w_in = x.shape
    h_out, w_out = out_hw
    orig_dtype = x.dtype
    # bf16 stays bf16 on the MXU (f32 accumulation); everything else computes in f32.
    compute_dtype = jnp.bfloat16 if orig_dtype == jnp.bfloat16 else jnp.float32

    # Lane-dense output width: pad Ww^T columns to a multiple of 128, slice afterwards.
    w_pad = max(128, _cdiv(w_out, 128) * 128)

    wh = _bilinear_weight_matrix(h_out, h_in, align_corners).astype(compute_dtype)      # (H_out, H_in)
    ww = _bilinear_weight_matrix(w_out, w_in, align_corners)                            # (W_out, W_in)
    wwt = jnp.zeros((w_in, w_pad), jnp.float32).at[:, :w_out].set(ww.T).astype(compute_dtype)

    n = b * c
    io_bytes = jnp.dtype(orig_dtype).itemsize
    wt_bytes = jnp.dtype(compute_dtype).itemsize
    p, num_blocks = _pick_plane_block(
        n, h_in, w_in, h_out, w_pad, io_bytes, wt_bytes,
        budget_bytes=28 * 1024 * 1024)   # safe on v5e/v6e/v7x with headroom
    n_pad = p * num_blocks

    x_flat = x.reshape(n, h_in, w_in)
    if n_pad != n:
        x_flat = jnp.pad(x_flat, ((0, n_pad - n), (0, 0), (0, 0)))

    # TODO(synk): very large frames (e.g. 4K) would additionally need W/H tiling of the
    # dense weight matrices (or a 2-tap gather+lerp path); not implemented here.
    out_flat = pl.pallas_call(
        _resize_kernel,
        out_shape=jax.ShapeDtypeStruct((n_pad, h_out, w_pad), orig_dtype),
        grid=(num_blocks,),
        in_specs=[
            pl.BlockSpec((h_out, h_in), lambda i: (0, 0)),   # Wh   (VMEM-resident)
            pl.BlockSpec((w_in, w_pad), lambda i: (0, 0)),   # Ww^T (VMEM-resident, lane-padded)
            pl.BlockSpec((p, h_in, w_in), lambda i: (i, 0, 0)),
        ],
        out_specs=pl.BlockSpec((p, h_out, w_pad), lambda i: (i, 0, 0)),
        compiler_params=pltpu.CompilerParams(
            dimension_semantics=("parallel",),
            vmem_limit_bytes=48 * 1024 * 1024,
        ),
    )(wh, wwt, x_flat)

    out = out_flat[:n, :, :w_out].reshape(b, c, h_out, w_out)
    return out


# ----------------------------------------------------------------------------
# Module-equivalent wrapper
# ----------------------------------------------------------------------------
class Resize:
    def __init__(
        self,
        size: Union[int, Tuple[int, int]],
        interpolation: str = "bilinear",
        align_corners: Optional[bool] = None,
        side: str = "short",
    ) -> None:
        if interpolation != "bilinear":
            # TODO(synk): only 'bilinear' interpolation implemented in the Pallas path.
            raise NotImplementedError("Only bilinear interpolation is implemented.")
        self.size = size
        self.interpolation = interpolation
        self.align_corners = bool(align_corners) if align_corners is not None else False
        self.side = side

    def __call__(self, x: jnp.ndarray) -> jnp.ndarray:
        h, w = x.shape[-2:]
        size = self.size
        if isinstance(size, int):
            aspect_ratio = w / h
            size = _side_to_image_size(size, aspect_ratio, self.side)
        if tuple(size) == (h, w):
            return x
        return _bilinear_resize_pallas(x, tuple(size), self.align_corners)


if __name__ == "__main__":
    key = jax.random.PRNGKey(0)

    # --- Test 1: f32 downscale (flattened-matmul path, H % 8 == 0) ------------
    x = jax.random.uniform(key, (2, 4, 16, 16), dtype=jnp.float32)
    out = Resize((6, 8))(x)
    out = jax.block_until_ready(out)
    assert out.shape == (2, 4, 6, 8), out.shape
    assert out.dtype == x.dtype
    wh = _bilinear_weight_matrix(6, 16, False)
    ww = _bilinear_weight_matrix(8, 16, False)
    ref = jnp.einsum("oh,bchw,pw->bcop", wh, x, ww)
    assert jnp.allclose(out, ref, atol=1e-5), float(jnp.max(jnp.abs(out - ref)))

    # --- Test 2: bf16 upscale (bf16 MXU inputs, f32 accumulation) -------------
    xb_f32 = jax.random.uniform(jax.random.PRNGKey(1), (2, 3, 8, 24), dtype=jnp.float32)
    xb = xb_f32.astype(jnp.bfloat16)
    out_b = jax.block_until_ready(Resize((16, 40))(xb))
    assert out_b.shape == (2, 3, 16, 40) and out_b.dtype == jnp.bfloat16
    wh2 = _bilinear_weight_matrix(16, 8, False)
    ww2 = _bilinear_weight_matrix(40, 24, False)
    ref_b = jnp.einsum("oh,bchw,pw->bcop", wh2, xb.astype(jnp.float32), ww2)
    err_b = float(jnp.max(jnp.abs(out_b.astype(jnp.float32) - ref_b)))
    assert err_b < 3e-2, err_b

    # --- Test 3: odd H (per-plane fallback path) + int-size 'short' side ------
    xo = jax.random.uniform(jax.random.PRNGKey(2), (1, 2, 10, 12), dtype=jnp.float32)
    out_o = jax.block_until_ready(Resize((7, 9))(xo))
    wh3 = _bilinear_weight_matrix(7, 10, False)
    ww3 = _bilinear_weight_matrix(9, 12, False)
    ref_o = jnp.einsum("oh,bchw,pw->bcop", wh3, xo, ww3)
    assert out_o.shape == (1, 2, 7, 9)
    assert jnp.allclose(out_o, ref_o, atol=1e-5), float(jnp.max(jnp.abs(out_o - ref_o)))

    out_s = jax.block_until_ready(Resize(8)(x))   # int size, square input -> (8, 8)
    assert out_s.shape == (2, 4, 8, 8), out_s.shape

    print("KERNEL_OK")
</pallas_src>

<mosaic_0001>
module attributes {stable_mosaic.version = 11 : i64} {
  func.func @_resize_kernel(%arg0: i32, %arg1: memref<6x16xf32, #tpu.memory_space<vmem>>, %arg2: memref<16x128xf32, #tpu.memory_space<vmem>>, %arg3: memref<8x16x16xf32, #tpu.memory_space<vmem>>, %arg4: memref<8x6x128xf32, #tpu.memory_space<vmem>>) attributes {dimension_semantics = [#tpu.dimension_semantics<parallel>], iteration_bounds = array<i64: 1>, scalar_prefetch = 0 : i64, scratch_operands = 0 : i64, tpu.core_type = #tpu.core_type<tc>, window_params = [{pipeline_mode = #tpu.pipeline_mode<synchronous>, transform_indices = @transform_0, window_bounds = array<i64: 6, 16>}, {pipeline_mode = #tpu.pipeline_mode<synchronous>, transform_indices = @transform_1, window_bounds = array<i64: 16, 128>}, {transform_indices = @transform_2, window_bounds = array<i64: 8, 16, 16>}, {transform_indices = @transform_3, window_bounds = array<i64: 8, 6, 128>}]} {
    %c0 = arith.constant 0 : index
    %c0_0 = arith.constant 0 : index
    %0 = vector.load %arg1[%c0, %c0_0] : memref<6x16xf32, #tpu.memory_space<vmem>>, vector<6x16xf32>
    %c0_1 = arith.constant 0 : index
    %c0_2 = arith.constant 0 : index
    %1 = vector.load %arg2[%c0_1, %c0_2] : memref<16x128xf32, #tpu.memory_space<vmem>>, vector<16x128xf32>
    %c0_3 = arith.constant 0 : index
    %c0_4 = arith.constant 0 : index
    %c0_5 = arith.constant 0 : index
    %2 = vector.load %arg3[%c0_3, %c0_4, %c0_5] : memref<8x16x16xf32, #tpu.memory_space<vmem>>, vector<8x16x16xf32>
    %3 = vector.shape_cast %2 : vector<8x16x16xf32> to vector<128x16xf32>
    %cst = arith.constant dense<0.000000e+00> : vector<128x128xf32>
    %4 = tpu.matmul %3, %1, %cst {dimension_numbers = #tpu.dot_dimension_numbers<[1], [0], [0], [1], [0, 0, 1, 1], [], []>} : vector<128x16xf32>, vector<16x128xf32>, vector<128x128xf32> -> vector<128x128xf32>
    %5 = vector.shape_cast %4 : vector<128x128xf32> to vector<8x16x128xf32>
    %6 = vector.extract_strided_slice %5 {offsets = [0, 0, 0], sizes = [1, 16, 128], strides = [1, 1, 1]} : vector<8x16x128xf32> to vector<1x16x128xf32>
    %7 = vector.shape_cast %6 : vector<1x16x128xf32> to vector<16x128xf32>
    %cst_6 = arith.constant dense<0.000000e+00> : vector<6x128xf32>
    %8 = tpu.matmul %0, %7, %cst_6 {dimension_numbers = #tpu.dot_dimension_numbers<[1], [0], [0], [1], [0, 0, 1, 1], [], []>} : vector<6x16xf32>, vector<16x128xf32>, vector<6x128xf32> -> vector<6x128xf32>
    %c0_7 = arith.constant 0 : index
    %c0_8 = arith.constant 0 : index
    %c0_9 = arith.constant 0 : index
    %9 = vector.load %arg4[%c0_7, %c0_8, %c0_9] : memref<8x6x128xf32, #tpu.memory_space<vmem>>, vector<1x6x128xf32>
    %10 = vector.shape_cast %9 : vector<1x6x128xf32> to vector<6x128xf32>
    %11 = vector.shape_cast %8 : vector<6x128xf32> to vector<1x6x128xf32>
    tpu.vector_store %arg4[%c0_7, %c0_8, %c0_9], %11 {strides = array<i32>} : memref<8x6x128xf32, #tpu.memory_space<vmem>>, vector<1x6x128xf32>,
    %12 = vector.extract_strided_slice %5 {offsets = [1, 0, 0], sizes = [1, 16, 128], strides = [1, 1, 1]} : vector<8x16x128xf32> to vector<1x16x128xf32>
    %13 = vector.shape_cast %12 : vector<1x16x128xf32> to vector<16x128xf32>
    %cst_10 = arith.constant dense<0.000000e+00> : vector<6x128xf32>
    %14 = tpu.matmul %0, %13, %cst_10 {dimension_numbers = #tpu.dot_dimension_numbers<[1], [0], [0], [1], [0, 0, 1, 1], [], []>} : vector<6x16xf32>, vector<16x128xf32>, vector<6x128xf32> -> vector<6x128xf32>
    %c1 = arith.constant 1 : index
    %c0_11 = arith.constant 0 : index
    %c0_12 = arith.constant 0 : index
    %15 = vector.load %arg4[%c1, %c0_11, %c0_12] : memref<8x6x128xf32, #tpu.memory_space<vmem>>, vector<1x6x128xf32>
    %16 = vector.shape_cast %15 : vector<1x6x128xf32> to vector<6x128xf32>
    %17 = vector.shape_cast %14 : vector<6x128xf32> to vector<1x6x128xf32>
    tpu.vector_store %arg4[%c1, %c0_11, %c0_12], %17 {strides = array<i32>} : memref<8x6x128xf32, #tpu.memory_space<vmem>>, vector<1x6x128xf32>,
    %18 = vector.extract_strided_slice %5 {offsets = [2, 0, 0], sizes = [1, 16, 128], strides = [1, 1, 1]} : vector<8x16x128xf32> to vector<1x16x128xf32>
    %19 = vector.shape_cast %18 : vector<1x16x128xf32> to vector<16x128xf32>
    %cst_13 = arith.constant dense<0.000000e+00> : vector<6x128xf32>
    %20 = tpu.matmul %0, %19, %cst_13 {dimension_numbers = #tpu.dot_dimension_numbers<[1], [0], [0], [1], [0, 0, 1, 1], [], []>} : vector<6x16xf32>, vector<16x128xf32>, vector<6x128xf32> -> vector<6x128xf32>
    %c2 = arith.constant 2 : index
    %c0_14 = arith.constant 0 : index
    %c0_15 = arith.constant 0 : index
    %21 = vector.load %arg4[%c2, %c0_14, %c0_15] : memref<8x6x128xf32, #tpu.memory_space<vmem>>, vector<1x6x128xf32>
    %22 = vector.shape_cast %21 : vector<1x6x128xf32> to vector<6x128xf32>
    %23 = vector.shape_cast %20 : vector<6x128xf32> to vector<1x6x128xf32>
    tpu.vector_store %arg4[%c2, %c0_14, %c0_15], %23 {strides = array<i32>} : memref<8x6x128xf32, #tpu.memory_space<vmem>>, vector<1x6x128xf32>,
    %24 = vector.extract_strided_slice %5 {offsets = [3, 0, 0], sizes = [1, 16, 128], strides = [1, 1, 1]} : vector<8x16x128xf32> to vector<1x16x128xf32>
    %25 = vector.shape_cast %24 : vector<1x16x128xf32> to vector<16x128xf32>
    %cst_16 = arith.constant dense<0.000000e+00> : vector<6x128xf32>
    %26 = tpu.matmul %0, %25, %cst_16 {dimension_numbers = #tpu.dot_dimension_numbers<[1], [0], [0], [1], [0, 0, 1, 1], [], []>} : vector<6x16xf32>, vector<16x128xf32>, vector<6x128xf32> -> vector<6x128xf32>
    %c3 = arith.constant 3 : index
    %c0_17 = arith.constant 0 : index
    %c0_18 = arith.constant 0 : index
    %27 = vector.load %arg4[%c3, %c0_17, %c0_18] : memref<8x6x128xf32, #tpu.memory_space<vmem>>, vector<1x6x128xf32>
    %28 = vector.shape_cast %27 : vector<1x6x128xf32> to vector<6x128xf32>
    %29 = vector.shape_cast %26 : vector<6x128xf32> to vector<1x6x128xf32>
    tpu.vector_store %arg4[%c3, %c0_17, %c0_18], %29 {strides = array<i32>} : memref<8x6x128xf32, #tpu.memory_space<vmem>>, vector<1x6x128xf32>,
    %30 = vector.extract_strided_slice %5 {offsets = [4, 0, 0], sizes = [1, 16, 128], strides = [1, 1, 1]} : vector<8x16x128xf32> to vector<1x16x128xf32>
    %31 = vector.shape_cast %30 : vector<1x16x128xf32> to vector<16x128xf32>
    %cst_19 = arith.constant dense<0.000000e+00> : vector<6x128xf32>
    %32 = tpu.matmul %0, %31, %cst_19 {dimension_numbers = #tpu.dot_dimension_numbers<[1], [0], [0], [1], [0, 0, 1, 1], [], []>} : vector<6x16xf32>, vector<16x128xf32>, vector<6x128xf32> -> vector<6x128xf32>
    %c4 = arith.constant 4 : index
    %c0_20 = arith.constant 0 : index
    %c0_21 = arith.constant 0 : index
    %33 = vector.load %arg4[%c4, %c0_20, %c0_21] : memref<8x6x128xf32, #tpu.memory_space<vmem>>, vector<1x6x128xf32>
    %34 = vector.shape_cast %33 : vector<1x6x128xf32> to vector<6x128xf32>
    %35 = vector.shape_cast %32 : vector<6x128xf32> to vector<1x6x128xf32>
    tpu.vector_store %arg4[%c4, %c0_20, %c0_21], %35 {strides = array<i32>} : memref<8x6x128xf32, #tpu.memory_space<vmem>>, vector<1x6x128xf32>,
    %36 = vector.extract_strided_slice %5 {offsets = [5, 0, 0], sizes = [1, 16, 128], strides = [1, 1, 1]} : vector<8x16x128xf32> to vector<1x16x128xf32>
    %37 = vector.shape_cast %36 : vector<1x16x128xf32> to vector<16x128xf32>
    %cst_22 = arith.constant dense<0.000000e+00> : vector<6x128xf32>
    %38 = tpu.matmul %0, %37, %cst_22 {dimension_numbers = #tpu.dot_dimension_numbers<[1], [0], [0], [1], [0, 0, 1, 1], [], []>} : vector<6x16xf32>, vector<16x128xf32>, vector<6x128xf32> -> vector<6x128xf32>
    %c5 = arith.constant 5 : index
    %c0_23 = arith.constant 0 : index
    %c0_24 = arith.constant 0 : index
    %39 = vector.load %arg4[%c5, %c0_23, %c0_24] : memref<8x6x128xf32, #tpu.memory_space<vmem>>, vector<1x6x128xf32>
    %40 = vector.shape_cast %39 : vector<1x6x128xf32> to vector<6x128xf32>
    %41 = vector.shape_cast %38 : vector<6x128xf32> to vector<1x6x128xf32>
    tpu.vector_store %arg4[%c5, %c0_23, %c0_24], %41 {strides = array<i32>} : memref<8x6x128xf32, #tpu.memory_space<vmem>>, vector<1x6x128xf32>,
    %42 = vector.extract_strided_slice %5 {offsets = [6, 0, 0], sizes = [1, 16, 128], strides = [1, 1, 1]} : vector<8x16x128xf32> to vector<1x16x128xf32>
    %43 = vector.shape_cast %42 : vector<1x16x128xf32> to vector<16x128xf32>
    %cst_25 = arith.constant dense<0.000000e+00> : vector<6x128xf32>
    %44 = tpu.matmul %0, %43, %cst_25 {dimension_numbers = #tpu.dot_dimension_numbers<[1], [0], [0], [1], [0, 0, 1, 1], [], []>} : vector<6x16xf32>, vector<16x128xf32>, vector<6x128xf32> -> vector<6x128xf32>
    %c6 = arith.constant 6 : index
    %c0_26 = arith.constant 0 : index
    %c0_27 = arith.constant 0 : index
    %45 = vector.load %arg4[%c6, %c0_26, %c0_27] : memref<8x6x128xf32, #tpu.memory_space<vmem>>, vector<1x6x128xf32>
    %46 = vector.shape_cast %45 : vector<1x6x128xf32> to vector<6x128xf32>
    %47 = vector.shape_cast %44 : vector<6x128xf32> to vector<1x6x128xf32>
    tpu.vector_store %arg4[%c6, %c0_26, %c0_27], %47 {strides = array<i32>} : memref<8x6x128xf32, #tpu.memory_space<vmem>>, vector<1x6x128xf32>,
    %48 = vector.extract_strided_slice %5 {offsets = [7, 0, 0], sizes = [1, 16, 128], strides = [1, 1, 1]} : vector<8x16x128xf32> to vector<1x16x128xf32>
    %49 = vector.shape_cast %48 : vector<1x16x128xf32> to vector<16x128xf32>
    %cst_28 = arith.constant dense<0.000000e+00> : vector<6x128xf32>
    %50 = tpu.matmul %0, %49, %cst_28 {dimension_numbers = #tpu.dot_dimension_numbers<[1], [0], [0], [1], [0, 0, 1, 1], [], []>} : vector<6x16xf32>, vector<16x128xf32>, vector<6x128xf32> -> vector<6x128xf32>
    %c7 = arith.constant 7 : index
    %c0_29 = arith.constant 0 : index
    %c0_30 = arith.constant 0 : index
    %51 = vector.load %arg4[%c7, %c0_29, %c0_30] : memref<8x6x128xf32, #tpu.memory_space<vmem>>, vector<1x6x128xf32>
    %52 = vector.shape_cast %51 : vector<1x6x128xf32> to vector<6x128xf32>
    %53 = vector.shape_cast %50 : vector<6x128xf32> to vector<1x6x128xf32>
    tpu.vector_store %arg4[%c7, %c0_29, %c0_30], %53 {strides = array<i32>} : memref<8x6x128xf32, #tpu.memory_space<vmem>>, vector<1x6x128xf32>,
    return
  }
  func.func @transform_0(%arg0: i32) -> (i32, i32) {
    %c0_i32 = arith.constant 0 : i32
    %c0_i32_0 = arith.constant 0 : i32
    %c0_i32_1 = arith.constant 0 : i32
    return %c0_i32, %c0_i32_0 : i32, i32
  }
  func.func @transform_1(%arg0: i32) -> (i32, i32) {
    %c0_i32 = arith.constant 0 : i32
    %c0_i32_0 = arith.constant 0 : i32
    %c0_i32_1 = arith.constant 0 : i32
    return %c0_i32, %c0_i32_0 : i32, i32
  }
  func.func @transform_2(%arg0: i32) -> (i32, i32, i32) {
    %c0_i32 = arith.constant 0 : i32
    %c0_i32_0 = arith.constant 0 : i32
    %c0_i32_1 = arith.constant 0 : i32
    return %arg0, %c0_i32, %c0_i32_0 : i32, i32, i32
  }
  func.func @transform_3(%arg0: i32) -> (i32, i32, i32) {
    %c0_i32 = arith.constant 0 : i32
    %c0_i32_0 = arith.constant 0 : i32
    %c0_i32_1 = arith.constant 0 : i32
    return %arg0, %c0_i32, %c0_i32_0 : i32, i32, i32
  }
}

</mosaic_0001>

<llo_original>
// kernel: tpu_custom_call.1
$region0: #{tpu_custom_call.1}
  #allocation0 [shape = 'u32[]', space=smem, size = 0x4, offset = 0x4, fixed_abs, tag = 'smem constant byte address 0x4 - core index']
  #allocation1 [shape = 'u32[144,128]{1,0:T(1,128)}', space=vmem, size = 0x12000, scoped, tag = 'internal scratch']
  %s0 = inlined_call_operand.hbm [shape: f32[6,16], index: 0, kind: input, shape index: {}]
  %s1 = inlined_call_operand.hbm [shape: f32[16,128], index: 1, kind: input, shape index: {}]
  %s2 = inlined_call_operand.hbm [shape: f32[8,16,16], index: 2, kind: input, shape index: {}]
  %s3 = inlined_call_operand.vmem [shape: f32[8,6,128], index: 3, kind: output, shape index: {}]
  %s4 = sld [smem:[#allocation0]]
  $region34: #{tpu_custom_call.1} parent=0
    _
  %s6 = ssub.s32 1, %s4
  %s7 = scalar_select 0, %s6, %s4
  $region1: #{tpu_custom_call.1} parent=0
    #allocation2 [shape = 'u8[4096]{0}', space=vmem, size = 0x1000, scoped, tag = 'input window, operand 0, single buffered']
    #allocation3 [shape = 's32[1]{0}', space=sflag, size = 0x4, scoped, tag = 'scoped memory for tpu_custom_call.1']
    #allocation4 [shape = 'u8[8192]{0}', space=vmem, size = 0x2000, scoped, tag = 'input window, operand 1, single buffered']
    #allocation5 [shape = 's32[1]{0}', space=sflag, size = 0x4, scoped, tag = 'scoped memory for tpu_custom_call.1']
    #allocation6 [shape = 'u8[65536]{0}', space=vmem, size = 0x10000, scoped, tag = 'input window, operand 2, single buffered']
    %8 = vsyncpa [#allocation3], 0
    %9 = vsyncpa [#allocation5], 0
    // Predicated region
    $region2: #{tpu_custom_call.1} parent=1 // pred_check
      _
    $region3: #{tpu_custom_call.1} parent=1 // pred_check_branch
      %11 = sbr.rel (0) target = $region5
    $region4: #{tpu_custom_call.1} parent=1 // pred_region
      %s13 = ssub.s32 128, 128
      %14 = vsyncadd [#allocation3], %s13
      %s16 = sshll.u32 [#allocation2], 4
      %s17 = int_to_ptr.vmem [resolvable:$true] %s16
      %19 = dma.hbm_to_vmem [thread:$0]  %s0, 128, %s17, [#allocation3]
    $region5: #{tpu_custom_call.1} parent=1 // pred_fallthru
      _
    // Predicated region
    $region6: #{tpu_custom_call.1} parent=1 // pred_check
      _
    $region7: #{tpu_custom_call.1} parent=1 // pred_check_branch
      %21 = sbr.rel (0) target = $region9
    $region8: #{tpu_custom_call.1} parent=1 // pred_region
      %s23 = ssub.s32 256, 256
      %24 = vsyncadd [#allocation5], %s23
      %s25 = sshll.u32 [#allocation4], 4
      %s26 = int_to_ptr.vmem [resolvable:$true] %s25
      %31 = dma.hbm_to_vmem [thread:$0]  %s1, 256, %s26, [#allocation5], 128, 128, 8
    $region9: #{tpu_custom_call.1} parent=1 // pred_fallthru
      _
    // Predicated region
    $region10: #{tpu_custom_call.1} parent=1 // pred_check
      _
    $region11: #{tpu_custom_call.1} parent=1 // pred_check_branch
      %33 = sbr.rel (0) target = $region13
    $region12: #{tpu_custom_call.1} parent=1 // pred_region
      %s35 = ssub.s32 2048, 2048
      %36 = vsyncadd [#allocation5], %s35
      %s37 = sshll.u32 [#allocation6], 4
      %s38 = int_to_ptr.vmem [resolvable:$true] %s37
      %43 = dma.hbm_to_vmem [thread:$0]  %s2, 2048, %s38, [#allocation5], 128, 128, 8
    $region13: #{tpu_custom_call.1} parent=1 // pred_fallthru
      _
    // Predicated region
    $region14: #{tpu_custom_call.1} parent=1 // pred_check
      _
    $region15: #{tpu_custom_call.1} parent=1 // pred_check_branch
      %45 = sbr.rel (0) target = $region17
    $region16: #{tpu_custom_call.1} parent=1 // pred_region
      %46 = dma.done [#allocation3], 128
    $region17: #{tpu_custom_call.1} parent=1 // pred_fallthru
      _
    // Predicated region
    $region18: #{tpu_custom_call.1} parent=1 // pred_check
      _
    $region19: #{tpu_custom_call.1} parent=1 // pred_check_branch
      %48 = sbr.rel (0) target = $region21
    $region20: #{tpu_custom_call.1} parent=1 // pred_region
      %49 = dma.done [#allocation5], 256
    $region21: #{tpu_custom_call.1} parent=1 // pred_fallthru
      _
    // Predicated region
    $region22: #{tpu_custom_call.1} parent=1 // pred_check
      _
    $region23: #{tpu_custom_call.1} parent=1 // pred_check_branch
      %51 = sbr.rel (0) target = $region25
    $region24: #{tpu_custom_call.1} parent=1 // pred_region
      %52 = dma.done [#allocation5], 2048
    $region25: #{tpu_custom_call.1} parent=1 // pred_fallthru
      _
    %v53 = vld [vmem:[#allocation2] sm:$0x3f]
    %v54 = vld [vmem:[#allocation4] sm:$0xff]
    %v55 = vld [vmem:[#allocation4 + $0x8] sm:$0xff]
    %v56 = vld [vmem:[#allocation6] sm:$0xff]
    %v57 = vld [vmem:[#allocation6 + $0x8] sm:$0xff]
    %v58 = vld [vmem:[#allocation6 + $0x10] sm:$0xff]
    %v59 = vld [vmem:[#allocation6 + $0x18] sm:$0xff]
    %v60 = vld [vmem:[#allocation6 + $0x20] sm:$0xff]
    %v61 = vld [vmem:[#allocation6 + $0x28] sm:$0xff]
    %v62 = vld [vmem:[#allocation6 + $0x30] sm:$0xff]
    %v63 = vld [vmem:[#allocation6 + $0x38] sm:$0xff]
    %v64 = vld [vmem:[#allocation6 + $0x40] sm:$0xff]
    %v65 = vld [vmem:[#allocation6 + $0x48] sm:$0xff]
    %v66 = vld [vmem:[#allocation6 + $0x50] sm:$0xff]
    %v67 = vld [vmem:[#allocation6 + $0x58] sm:$0xff]
    %v68 = vld [vmem:[#allocation6 + $0x60] sm:$0xff]
    %v69 = vld [vmem:[#allocation6 + $0x68] sm:$0xff]
    %v70 = vld [vmem:[#allocation6 + $0x70] sm:$0xff]
    %v71 = vld [vmem:[#allocation6 + $0x78] sm:$0xff]
    %vm72 = vcmask 130048
    %v74 = vsel %vm72, %v56, 0
    %v77 = vsel %vm72, %v57, 0
    %v80 = vsel %vm72, %v58, 0
    %v83 = vsel %vm72, %v59, 0
    %v86 = vsel %vm72, %v60, 0
    %v89 = vsel %vm72, %v61, 0
    %v92 = vsel %vm72, %v62, 0
    %v95 = vsel %vm72, %v63, 0
    %v98 = vsel %vm72, %v64, 0
    %v101 = vsel %vm72, %v65, 0
    %v104 = vsel %vm72, %v66, 0
    %v107 = vsel %vm72, %v67, 0
    %v110 = vsel %vm72, %v68, 0
    %v113 = vsel %vm72, %v69, 0
    %v116 = vsel %vm72, %v70, 0
    %v119 = vsel %vm72, %v71, 0
    %121 = vmatprep.subr.mxu0 0.0
    %122 = vmatpush1.msra.mxu0 %v54
    %123 = vmatprep.subr.mxu0 0.0
    %124 = vmatpush1.msra.mxu0 %v55
    %125 = vmatprep.subr.mxu0 0.0
    %126 = vmatpush1.msra.mxu0 0.0
    %127 = vmatprep.subr.mxu0 0.0
    %128 = vmatpush1.msra.mxu0 0.0
    %129 = vmatprep.subr.mxu0 0.0
    %130 = vmatpush1.msra.mxu0 0.0
    %131 = vmatprep.subr.mxu0 0.0
    %132 = vmatpush1.msra.mxu0 0.0
    %133 = vmatprep.subr.mxu0 0.0
    %134 = vmatpush1.msra.mxu0 0.0
    %135 = vmatprep.subr.mxu0 0.0
    %136 = vmatpush1.msra.mxu0 0.0
    %137 = vmatprep.subr.mxu0 0.0
    %138 = vmatpush1.msra.mxu0 0.0
    %139 = vmatprep.subr.mxu0 0.0
    %140 = vmatpush1.msra.mxu0 0.0
    %141 = vmatprep.subr.mxu0 0.0
    %142 = vmatpush1.msra.mxu0 0.0
    %143 = vmatprep.subr.mxu0 0.0
    %144 = vmatpush1.msra.mxu0 0.0
    %145 = vmatprep.subr.mxu0 0.0
    %146 = vmatpush1.msra.mxu0 0.0
    %147 = vmatprep.subr.mxu0 0.0
    %148 = vmatpush1.msra.mxu0 0.0
    %149 = vmatprep.subr.mxu0 0.0
    %150 = vmatpush1.msra.mxu0 0.0
    %151 = vmatprep.subr.mxu0 0.0
    %152 = vmatpush1.msra.mxu0 0.0
    %153 = vmatprep.subr.mxu0 0.0
    %154 = vmatpush1.msra.mxu0 0.0
    %155 = vmatprep.subr.mxu0 0.0
    %156 = vmatpush1.msra.mxu0 0.0
    %157 = vmatprep.subr.mxu0 0.0
    %158 = vmatpush1.msra.mxu0 0.0
    %159 = vmatprep.subr.mxu0 0.0
    %160 = vmatpush1.msra.mxu0 0.0
    %161 = vmatprep.subr.mxu0 0.0
    %162 = vmatpush1.msra.mxu0 0.0
    %163 = vmatprep.subr.mxu0 0.0
    %164 = vmatpush1.msra.mxu0 0.0
    %165 = vmatprep.subr.mxu0 0.0
    %166 = vmatpush1.msra.mxu0 0.0
    %167 = vmatprep.subr.mxu0 0.0
    %168 = vmatpush1.msra.mxu0 0.0
    %169 = vmatprep.subr.mxu0 0.0
    %170 = vmatpush1.msra.mxu0 0.0
    %171 = vmatprep.subr.mxu0 0.0
    %172 = vmatpush1.msra.mxu0 0.0
    %173 = vmatprep.subr.mxu0 0.0
    %174 = vmatpush1.msra.mxu0 0.0
    %175 = vmatprep.subr.mxu0 0.0
    %176 = vmatpush1.msra.mxu0 0.0
    %177 = vmatprep.subr.mxu0 0.0
    %178 = vmatpush1.msra.mxu0 0.0
    %179 = vmatprep.subr.mxu0 0.0
    %180 = vmatpush1.msra.mxu0 0.0
    %181 = vmatprep.subr.mxu0 0.0
    %182 = vmatpush1.msra.mxu0 0.0
    %183 = vmatprep.subr.mxu0 0.0
    %184 = vmatpush1.msra.mxu0 0.0
    %185 = vmatprep.mubr.f32.mxu0 0.0
    %186 = vmatmul.mubr.f32.gmra.mrb[0].mxu0 %v74
    %v187 = vpop.f32.mrb[0].mxu0
    %v188 = vadd.f32 0.0, %v187
    %v189 = vpop.f32.mrb[0].mxu0
    %190 = vmatprep.mubr.f32.mxu0 0.0
    %191 = vmatmul.mubr.f32.gmra.mrb[0].mxu0 %v77
    %v192 = vpop.f32.mrb[0].mxu0
    %v193 = vadd.f32 0.0, %v192
    %v194 = vpop.f32.mrb[0].mxu0
    %195 = vmatprep.mubr.f32.mxu0 0.0
    %196 = vmatmul.mubr.f32.gmra.mrb[0].mxu0 %v80
    %v197 = vpop.f32.mrb[0].mxu0
    %v198 = vadd.f32 0.0, %v197
    %v199 = vpop.f32.mrb[0].mxu0
    %200 = vmatprep.mubr.f32.mxu0 0.0
    %201 = vmatmul.mubr.f32.gmra.mrb[0].mxu0 %v83
    %v202 = vpop.f32.mrb[0].mxu0
    %v203 = vadd.f32 0.0, %v202
    %v204 = vpop.f32.mrb[0].mxu0
    %205 = vmatprep.mubr.f32.mxu0 0.0
    %206 = vmatmul.mubr.f32.gmra.mrb[0].mxu0 %v86
    %v207 = vpop.f32.mrb[0].mxu0
    %v208 = vadd.f32 0.0, %v207
    %v209 = vpop.f32.mrb[0].mxu0
    %210 = vmatprep.mubr.f32.mxu0 0.0
    %211 = vmatmul.mubr.f32.gmra.mrb[0].mxu0 %v89
    %v212 = vpop.f32.mrb[0].mxu0
    %v213 = vadd.f32 0.0, %v212
    %v214 = vpop.f32.mrb[0].mxu0
    %215 = vmatprep.mubr.f32.mxu0 0.0
    %216 = vmatmul.mubr.f32.gmra.mrb[0].mxu0 %v92
    %v217 = vpop.f32.mrb[0].mxu0
    %v218 = vadd.f32 0.0, %v217
    %v219 = vpop.f32.mrb[0].mxu0
    %220 = vmatprep.mubr.f32.mxu0 0.0
    %221 = vmatmul.mubr.f32.gmra.mrb[0].mxu0 %v95
    %v222 = vpop.f32.mrb[0].mxu0
    %v223 = vadd.f32 0.0, %v222
    %v224 = vpop.f32.mrb[0].mxu0
    %225 = vmatprep.mubr.f32.mxu0 0.0
    %226 = vmatmul.mubr.f32.gmra.mrb[0].mxu0 %v98
    %v227 = vpop.f32.mrb[0].mxu0
    %v228 = vadd.f32 0.0, %v227
    %v229 = vpop.f32.mrb[0].mxu0
    %230 = vmatprep.mubr.f32.mxu0 0.0
    %231 = vmatmul.mubr.f32.gmra.mrb[0].mxu0 %v101
    %v232 = vpop.f32.mrb[0].mxu0
    %v233 = vadd.f32 0.0, %v232
    %v234 = vpop.f32.mrb[0].mxu0
    %235 = vmatprep.mubr.f32.mxu0 0.0
    %236 = vmatmul.mubr.f32.gmra.mrb[0].mxu0 %v104
    %v237 = vpop.f32.mrb[0].mxu0
    %v238 = vadd.f32 0.0, %v237
    %v239 = vpop.f32.mrb[0].mxu0
    %240 = vmatprep.mubr.f32.mxu0 0.0
    %241 = vmatmul.mubr.f32.gmra.mrb[0].mxu0 %v107
    %v242 = vpop.f32.mrb[0].mxu0
    %v243 = vadd.f32 0.0, %v242
    %v244 = vpop.f32.mrb[0].mxu0
    %245 = vmatprep.mubr.f32.mxu0 0.0
    %246 = vmatmul.mubr.f32.gmra.mrb[0].mxu0 %v110
    %v247 = vpop.f32.mrb[0].mxu0
    %v248 = vadd.f32 0.0, %v247
    %v249 = vpop.f32.mrb[0].mxu0
    %250 = vmatprep.mubr.f32.mxu0 0.0
    %251 = vmatmul.mubr.f32.gmra.mrb[0].mxu0 %v113
    %v252 = vpop.f32.mrb[0].mxu0
    %v253 = vadd.f32 0.0, %v252
    %v254 = vpop.f32.mrb[0].mxu0
    %255 = vmatprep.mubr.f32.mxu0 0.0
    %256 = vmatmul.mubr.f32.gmra.mrb[0].mxu0 %v116
    %v257 = vpop.f32.mrb[0].mxu0
    %v258 = vadd.f32 0.0, %v257
    %v259 = vpop.f32.mrb[0].mxu0
    %260 = vmatprep.mubr.f32.mxu0 0.0
    %261 = vmatmul.mubr.f32.gmra.mrb[0].mxu0 %v119
    %v262 = vpop.f32.mrb[0].mxu0
    %v263 = vadd.f32 0.0, %v262
    %v264 = vpop.f32.mrb[0].mxu0
    %265 = vdwg.mxu0
    %v267 = vsel %vm72, %v53, 0
    %269 = vmatprep.subr.mxu0 0.0
    %270 = vmatpush1.msra.mxu0 %v188
    %271 = vmatprep.subr.mxu0 0.0
    %272 = vmatpush1.msra.mxu0 %v193
    %273 = vmatprep.subr.mxu0 0.0
    %274 = vmatpush1.msra.mxu0 0.0
    %275 = vmatprep.subr.mxu0 0.0
    %276 = vmatpush1.msra.mxu0 0.0
    %277 = vmatprep.subr.mxu0 0.0
    %278 = vmatpush1.msra.mxu0 0.0
    %279 = vmatprep.subr.mxu0 0.0
    %280 = vmatpush1.msra.mxu0 0.0
    %281 = vmatprep.subr.mxu0 0.0
    %282 = vmatpush1.msra.mxu0 0.0
    %283 = vmatprep.subr.mxu0 0.0
    %284 = vmatpush1.msra.mxu0 0.0
    %285 = vmatprep.subr.mxu0 0.0
    %286 = vmatpush1.msra.mxu0 0.0
    %287 = vmatprep.subr.mxu0 0.0
    %288 = vmatpush1.msra.mxu0 0.0
    %289 = vmatprep.subr.mxu0 0.0
    %290 = vmatpush1.msra.mxu0 0.0
    %291 = vmatprep.subr.mxu0 0.0
    %292 = vmatpush1.msra.mxu0 0.0
    %293 = vmatprep.subr.mxu0 0.0
    %294 = vmatpush1.msra.mxu0 0.0
    %295 = vmatprep.subr.mxu0 0.0
    %296 = vmatpush1.msra.mxu0 0.0
    %297 = vmatprep.subr.mxu0 0.0
    %298 = vmatpush1.msra.mxu0 0.0
    %299 = vmatprep.subr.mxu0 0.0
    %300 = vmatpush1.msra.mxu0 0.0
    %301 = vmatprep.subr.mxu0 0.0
    %302 = vmatpush1.msra.mxu0 0.0
    %303 = vmatprep.subr.mxu0 0.0
    %304 = vmatpush1.msra.mxu0 0.0
    %305 = vmatprep.subr.mxu0 0.0
    %306 = vmatpush1.msra.mxu0 0.0
    %307 = vmatprep.subr.mxu0 0.0
    %308 = vmatpush1.msra.mxu0 0.0
    %309 = vmatprep.subr.mxu0 0.0
    %310 = vmatpush1.msra.mxu0 0.0
    %311 = vmatprep.subr.mxu0 0.0
    %312 = vmatpush1.msra.mxu0 0.0
    %313 = vmatprep.subr.mxu0 0.0
    %314 = vmatpush1.msra.mxu0 0.0
    %315 = vmatprep.subr.mxu0 0.0
    %316 = vmatpush1.msra.mxu0 0.0
    %317 = vmatprep.subr.mxu0 0.0
    %318 = vmatpush1.msra.mxu0 0.0
    %319 = vmatprep.subr.mxu0 0.0
    %320 = vmatpush1.msra.mxu0 0.0
    %321 = vmatprep.subr.mxu0 0.0
    %322 = vmatpush1.msra.mxu0 0.0
    %323 = vmatprep.subr.mxu0 0.0
    %324 = vmatpush1.msra.mxu0 0.0
    %325 = vmatprep.subr.mxu0 0.0
    %326 = vmatpush1.msra.mxu0 0.0
    %327 = vmatprep.subr.mxu0 0.0
    %328 = vmatpush1.msra.mxu0 0.0
    %329 = vmatprep.subr.mxu0 0.0
    %330 = vmatpush1.msra.mxu0 0.0
    %331 = vmatprep.subr.mxu0 0.0
    %332 = vmatpush1.msra.mxu0 0.0
    %333 = vmatprep.mubr.f32.mxu0 0.0
    %334 = vmatmul.mubr.f32.gmra.mrb[0].mxu0 %v267
    %v335 = vpop.f32.mrb[0].mxu0
    %v336 = vadd.f32 0.0, %v335
    %v337 = vpop.f32.mrb[0].mxu0
    %338 = vdwg.mxu0
    %339 = vst [vmem:[%s3] sm:$0x3f] %v336
    %340 = vmatprep.subr.mxu0 0.0
    %341 = vmatpush1.msra.mxu0 %v198
    %342 = vmatprep.subr.mxu0 0.0
    %343 = vmatpush1.msra.mxu0 %v203
    %344 = vmatprep.subr.mxu0 0.0
    %345 = vmatpush1.msra.mxu0 0.0
    %346 = vmatprep.subr.mxu0 0.0
    %347 = vmatpush1.msra.mxu0 0.0
    %348 = vmatprep.subr.mxu0 0.0
    %349 = vmatpush1.msra.mxu0 0.0
    %350 = vmatprep.subr.mxu0 0.0
    %351 = vmatpush1.msra.mxu0 0.0
    %352 = vmatprep.subr.mxu0 0.0
    %353 = vmatpush1.msra.mxu0 0.0
    %354 = vmatprep.subr.mxu0 0.0
    %355 = vmatpush1.msra.mxu0 0.0
    %356 = vmatprep.subr.mxu0 0.0
    %357 = vmatpush1.msra.mxu0 0.0
    %358 = vmatprep.subr.mxu0 0.0
    %359 = vmatpush1.msra.mxu0 0.0
    %360 = vmatprep.subr.mxu0 0.0
    %361 = vmatpush1.msra.mxu0 0.0
    %362 = vmatprep.subr.mxu0 0.0
    %363 = vmatpush1.msra.mxu0 0.0
    %364 = vmatprep.subr.mxu0 0.0
    %365 = vmatpush1.msra.mxu0 0.0
    %366 = vmatprep.subr.mxu0 0.0
    %367 = vmatpush1.msra.mxu0 0.0
    %368 = vmatprep.subr.mxu0 0.0
    %369 = vmatpush1.msra.mxu0 0.0
    %370 = vmatprep.subr.mxu0 0.0
    %371 = vmatpush1.msra.mxu0 0.0
    %372 = vmatprep.subr.mxu0 0.0
    %373 = vmatpush1.msra.mxu0 0.0
    %374 = vmatprep.subr.mxu0 0.0
    %375 = vmatpush1.msra.mxu0 0.0
    %376 = vmatprep.subr.mxu0 0.0
    %377 = vmatpush1.msra.mxu0 0.0
    %378 = vmatprep.subr.mxu0 0.0
    %379 = vmatpush1.msra.mxu0 0.0
    %380 = vmatprep.subr.mxu0 0.0
    %381 = vmatpush1.msra.mxu0 0.0
    %382 = vmatprep.subr.mxu0 0.0
    %383 = vmatpush1.msra.mxu0 0.0
    %384 = vmatprep.subr.mxu0 0.0
    %385 = vmatpush1.msra.mxu0 0.0
    %386 = vmatprep.subr.mxu0 0.0
    %387 = vmatpush1.msra.mxu0 0.0
    %388 = vmatprep.subr.mxu0 0.0
    %389 = vmatpush1.msra.mxu0 0.0
    %390 = vmatprep.subr.mxu0 0.0
    %391 = vmatpush1.msra.mxu0 0.0
    %392 = vmatprep.subr.mxu0 0.0
    %393 = vmatpush1.msra.mxu0 0.0
    %394 = vmatprep.subr.mxu0 0.0
    %395 = vmatpush1.msra.mxu0 0.0
    %396 = vmatprep.subr.mxu0 0.0
    %397 = vmatpush1.msra.mxu0 0.0
    %398 = vmatprep.subr.mxu0 0.0
    %399 = vmatpush1.msra.mxu0 0.0
    %400 = vmatprep.subr.mxu0 0.0
    %401 = vmatpush1.msra.mxu0 0.0
    %402 = vmatprep.subr.mxu0 0.0
    %403 = vmatpush1.msra.mxu0 0.0
    %404 = vmatprep.mubr.f32.mxu0 0.0
    %405 = vmatmul.mubr.f32.gmra.mrb[0].mxu0 %v267
    %v406 = vpop.f32.mrb[0].mxu0
    %v407 = vadd.f32 0.0, %v406
    %v408 = vpop.f32.mrb[0].mxu0
    %409 = vdwg.mxu0
    %s410 = scalar_lea.vmem %s3, 8
    %411 = vst [vmem:[%s410] sm:$0x3f] %v407
    %412 = vmatprep.subr.mxu0 0.0
    %413 = vmatpush1.msra.mxu0 %v208
    %414 = vmatprep.subr.mxu0 0.0
    %415 = vmatpush1.msra.mxu0 %v213
    %416 = vmatprep.subr.mxu0 0.0
    %417 = vmatpush1.msra.mxu0 0.0
    %418 = vmatprep.subr.mxu0 0.0
    %419 = vmatpush1.msra.mxu0 0.0
    %420 = vmatprep.subr.mxu0 0.0
    %421 = vmatpush1.msra.mxu0 0.0
    %422 = vmatprep.subr.mxu0 0.0
    %423 = vmatpush1.msra.mxu0 0.0
    %424 = vmatprep.subr.mxu0 0.0
    %425 = vmatpush1.msra.mxu0 0.0
    %426 = vmatprep.subr.mxu0 0.0
    %427 = vmatpush1.msra.mxu0 0.0
    %428 = vmatprep.subr.mxu0 0.0
    %429 = vmatpush1.msra.mxu0 0.0
    %430 = vmatprep.subr.mxu0 0.0
    %431 = vmatpush1.msra.mxu0 0.0
    %432 = vmatprep.subr.mxu0 0.0
    %433 = vmatpush1.msra.mxu0 0.0
    %434 = vmatprep.subr.mxu0 0.0
    %435 = vmatpush1.msra.mxu0 0.0
    %436 = vmatprep.subr.mxu0 0.0
    %437 = vmatpush1.msra.mxu0 0.0
    %438 = vmatprep.subr.mxu0 0.0
    %439 = vmatpush1.msra.mxu0 0.0
    %440 = vmatprep.subr.mxu0 0.0
    %441 = vmatpush1.msra.mxu0 0.0
    %442 = vmatprep.subr.mxu0 0.0
    %443 = vmatpush1.msra.mxu0 0.0
    %444 = vmatprep.subr.mxu0 0.0
    %445 = vmatpush1.msra.mxu0 0.0
    %446 = vmatprep.subr.mxu0 0.0
    %447 = vmatpush1.msra.mxu0 0.0
    %448 = vmatprep.subr.mxu0 0.0
    %449 = vmatpush1.msra.mxu0 0.0
    %450 = vmatprep.subr.mxu0 0.0
    %451 = vmatpush1.msra.mxu0 0.0
    %452 = vmatprep.subr.mxu0 0.0
    %453 = vmatpush1.msra.mxu0 0.0
    %454 = vmatprep.subr.mxu0 0.0
    %455 = vmatpush1.msra.mxu0 0.0
    %456 = vmatprep.subr.mxu0 0.0
    %457 = vmatpush1.msra.mxu0 0.0
    %458 = vmatprep.subr.mxu0 0.0
    %459 = vmatpush1.msra.mxu0 0.0
    %460 = vmatprep.subr.mxu0 0.0
    %461 = vmatpush1.msra.mxu0 0.0
    %462 = vmatprep.subr.mxu0 0.0
    %463 = vmatpush1.msra.mxu0 0.0
    %464 = vmatprep.subr.mxu0 0.0
    %465 = vmatpush1.msra.mxu0 0.0
    %466 = vmatprep.subr.mxu0 0.0
    %467 = vmatpush1.msra.mxu0 0.0
    %468 = vmatprep.subr.mxu0 0.0
    %469 = vmatpush1.msra.mxu0 0.0
    %470 = vmatprep.subr.mxu0 0.0
    %471 = vmatpush1.msra.mxu0 0.0
    %472 = vmatprep.subr.mxu0 0.0
    %473 = vmatpush1.msra.mxu0 0.0
    %474 = vmatprep.subr.mxu0 0.0
    %475 = vmatpush1.msra.mxu0 0.0
    %476 = vmatprep.mubr.f32.mxu0 0.0
    %477 = vmatmul.mubr.f32.gmra.mrb[0].mxu0 %v267
    %v478 = vpop.f32.mrb[0].mxu0
    %v479 = vadd.f32 0.0, %v478
    %v480 = vpop.f32.mrb[0].mxu0
    %481 = vdwg.mxu0
    %s482 = scalar_lea.vmem %s3, 16
    %483 = vst [vmem:[%s482] sm:$0x3f] %v479
    %484 = vmatprep.subr.mxu0 0.0
    %485 = vmatpush1.msra.mxu0 %v218
    %486 = vmatprep.subr.mxu0 0.0
    %487 = vmatpush1.msra.mxu0 %v223
    %488 = vmatprep.subr.mxu0 0.0
    %489 = vmatpush1.msra.mxu0 0.0
    %490 = vmatprep.subr.mxu0 0.0
    %491 = vmatpush1.msra.mxu0 0.0
    %492 = vmatprep.subr.mxu0 0.0
    %493 = vmatpush1.msra.mxu0 0.0
    %494 = vmatprep.subr.mxu0 0.0
    %495 = vmatpush1.msra.mxu0 0.0
    %496 = vmatprep.subr.mxu0 0.0
    %497 = vmatpush1.msra.mxu0 0.0
    %498 = vmatprep.subr.mxu0 0.0
    %499 = vmatpush1.msra.mxu0 0.0
    %500 = vmatprep.subr.mxu0 0.0
    %501 = vmatpush1.msra.mxu0 0.0
    %502 = vmatprep.subr.mxu0 0.0
    %503 = vmatpush1.msra.mxu0 0.0
    %504 = vmatprep.subr.mxu0 0.0
    %505 = vmatpush1.msra.mxu0 0.0
    %506 = vmatprep.subr.mxu0 0.0
    %507 = vmatpush1.msra.mxu0 0.0
    %508 = vmatprep.subr.mxu0 0.0
    %509 = vmatpush1.msra.mxu0 0.0
    %510 = vmatprep.subr.mxu0 0.0
    %511 = vmatpush1.msra.mxu0 0.0
    %512 = vmatprep.subr.mxu0 0.0
    %513 = vmatpush1.msra.mxu0 0.0
    %514 = vmatprep.subr.mxu0 0.0
    %515 = vmatpush1.msra.mxu0 0.0
    %516 = vmatprep.subr.mxu0 0.0
    %517 = vmatpush1.msra.mxu0 0.0
    %518 = vmatprep.subr.mxu0 0.0
    %519 = vmatpush1.msra.mxu0 0.0
    %520 = vmatprep.subr.mxu0 0.0
    %521 = vmatpush1.msra.mxu0 0.0
    %522 = vmatprep.subr.mxu0 0.0
    %523 = vmatpush1.msra.mxu0 0.0
    %524 = vmatprep.subr.mxu0 0.0
    %525 = vmatpush1.msra.mxu0 0.0
    %526 = vmatprep.subr.mxu0 0.0
    %527 = vmatpush1.msra.mxu0 0.0
    %528 = vmatprep.subr.mxu0 0.0
    %529 = vmatpush1.msra.mxu0 0.0
    %530 = vmatprep.subr.mxu0 0.0
    %531 = vmatpush1.msra.mxu0 0.0
    %532 = vmatprep.subr.mxu0 0.0
    %533 = vmatpush1.msra.mxu0 0.0
    %534 = vmatprep.subr.mxu0 0.0
    %535 = vmatpush1.msra.mxu0 0.0
    %536 = vmatprep.subr.mxu0 0.0
    %537 = vmatpush1.msra.mxu0 0.0
    %538 = vmatprep.subr.mxu0 0.0
    %539 = vmatpush1.msra.mxu0 0.0
    %540 = vmatprep.subr.mxu0 0.0
    %541 = vmatpush1.msra.mxu0 0.0
    %542 = vmatprep.subr.mxu0 0.0
    %543 = vmatpush1.msra.mxu0 0.0
    %544 = vmatprep.subr.mxu0 0.0
    %545 = vmatpush1.msra.mxu0 0.0
    %546 = vmatprep.subr.mxu0 0.0
    %547 = vmatpush1.msra.mxu0 0.0
    %548 = vmatprep.mubr.f32.mxu0 0.0
    %549 = vmatmul.mubr.f32.gmra.mrb[0].mxu0 %v267
    %v550 = vpop.f32.mrb[0].mxu0
    %v551 = vadd.f32 0.0, %v550
    %v552 = vpop.f32.mrb[0].mxu0
    %553 = vdwg.mxu0
    %s554 = scalar_lea.vmem %s3, 24
    %555 = vst [vmem:[%s554] sm:$0x3f] %v551
    %556 = vmatprep.subr.mxu0 0.0
    %557 = vmatpush1.msra.mxu0 %v228
    %558 = vmatprep.subr.mxu0 0.0
    %559 = vmatpush1.msra.mxu0 %v233
    %560 = vmatprep.subr.mxu0 0.0
    %561 = vmatpush1.msra.mxu0 0.0
    %562 = vmatprep.subr.mxu0 0.0
    %563 = vmatpush1.msra.mxu0 0.0
    %564 = vmatprep.subr.mxu0 0.0
    %565 = vmatpush1.msra.mxu0 0.0
    %566 = vmatprep.subr.mxu0 0.0
    %567 = vmatpush1.msra.mxu0 0.0
    %568 = vmatprep.subr.mxu0 0.0
    %569 = vmatpush1.msra.mxu0 0.0
    %570 = vmatprep.subr.mxu0 0.0
    %571 = vmatpush1.msra.mxu0 0.0
    %572 = vmatprep.subr.mxu0 0.0
    %573 = vmatpush1.msra.mxu0 0.0
    %574 = vmatprep.subr.mxu0 0.0
    %575 = vmatpush1.msra.mxu0 0.0
    %576 = vmatprep.subr.mxu0 0.0
    %577 = vmatpush1.msra.mxu0 0.0
    %578 = vmatprep.subr.mxu0 0.0
    %579 = vmatpush1.msra.mxu0 0.0
    %580 = vmatprep.subr.mxu0 0.0
    %581 = vmatpush1.msra.mxu0 0.0
    %582 = vmatprep.subr.mxu0 0.0
    %583 = vmatpush1.msra.mxu0 0.0
    %584 = vmatprep.subr.mxu0 0.0
    %585 = vmatpush1.msra.mxu0 0.0
    %586 = vmatprep.subr.mxu0 0.0
    %587 = vmatpush1.msra.mxu0 0.0
    %588 = vmatprep.subr.mxu0 0.0
    %589 = vmatpush1.msra.mxu0 0.0
    %590 = vmatprep.subr.mxu0 0.0
    %591 = vmatpush1.msra.mxu0 0.0
    %592 = vmatprep.subr.mxu0 0.0
    %593 = vmatpush1.msra.mxu0 0.0
    %594 = vmatprep.subr.mxu0 0.0
    %595 = vmatpush1.msra.mxu0 0.0
    %596 = vmatprep.subr.mxu0 0.0
    %597 = vmatpush1.msra.mxu0 0.0
    %598 = vmatprep.subr.mxu0 0.0
    %599 = vmatpush1.msra.mxu0 0.0
    %600 = vmatprep.subr.mxu0 0.0
    %601 = vmatpush1.msra.mxu0 0.0
    %602 = vmatprep.subr.mxu0 0.0
    %603 = vmatpush1.msra.mxu0 0.0
    %604 = vmatprep.subr.mxu0 0.0
    %605 = vmatpush1.msra.mxu0 0.0
    %606 = vmatprep.subr.mxu0 0.0
    %607 = vmatpush1.msra.mxu0 0.0
    %608 = vmatprep.subr.mxu0 0.0
    %609 = vmatpush1.msra.mxu0 0.0
    %610 = vmatprep.subr.mxu0 0.0
    %611 = vmatpush1.msra.mxu0 0.0
    %612 = vmatprep.subr.mxu0 0.0
    %613 = vmatpush1.msra.mxu0 0.0
    %614 = vmatprep.subr.mxu0 0.0
    %615 = vmatpush1.msra.mxu0 0.0
    %616 = vmatprep.subr.mxu0 0.0
    %617 = vmatpush1.msra.mxu0 0.0
    %618 = vmatprep.subr.mxu0 0.0
    %619 = vmatpush1.msra.mxu0 0.0
    %620 = vmatprep.mubr.f32.mxu0 0.0
    %621 = vmatmul.mubr.f32.gmra.mrb[0].mxu0 %v267
    %v622 = vpop.f32.mrb[0].mxu0
    %v623 = vadd.f32 0.0, %v622
    %v624 = vpop.f32.mrb[0].mxu0
    %625 = vdwg.mxu0
    %s626 = scalar_lea.vmem %s3, 32
    %627 = vst [vmem:[%s626] sm:$0x3f] %v623
    %628 = vmatprep.subr.mxu0 0.0
    %629 = vmatpush1.msra.mxu0 %v238
    %630 = vmatprep.subr.mxu0 0.0
    %631 = vmatpush1.msra.mxu0 %v243
    %632 = vmatprep.subr.mxu0 0.0
    %633 = vmatpush1.msra.mxu0 0.0
    %634 = vmatprep.subr.mxu0 0.0
    %635 = vmatpush1.msra.mxu0 0.0
    %636 = vmatprep.subr.mxu0 0.0
    %637 = vmatpush1.msra.mxu0 0.0
    %638 = vmatprep.subr.mxu0 0.0
    %639 = vmatpush1.msra.mxu0 0.0
    %640 = vmatprep.subr.mxu0 0.0
    %641 = vmatpush1.msra.mxu0 0.0
    %642 = vmatprep.subr.mxu0 0.0
    %643 = vmatpush1.msra.mxu0 0.0
    %644 = vmatprep.subr.mxu0 0.0
    %645 = vmatpush1.msra.mxu0 0.0
    %646 = vmatprep.subr.mxu0 0.0
    %647 = vmatpush1.msra.mxu0 0.0
    %648 = vmatprep.subr.mxu0 0.0
    %649 = vmatpush1.msra.mxu0 0.0
    %650 = vmatprep.subr.mxu0 0.0
    %651 = vmatpush1.msra.mxu0 0.0
    %652 = vmatprep.subr.mxu0 0.0
    %653 = vmatpush1.msra.mxu0 0.0
    %654 = vmatprep.subr.mxu0 0.0
    %655 = vmatpush1.msra.mxu0 0.0
    %656 = vmatprep.subr.mxu0 0.0
    %657 = vmatpush1.msra.mxu0 0.0
    %658 = vmatprep.subr.mxu0 0.0
    %659 = vmatpush1.msra.mxu0 0.0
    %660 = vmatprep.subr.mxu0 0.0
    %661 = vmatpush1.msra.mxu0 0.0
    %662 = vmatprep.subr.mxu0 0.0
    %663 = vmatpush1.msra.mxu0 0.0
    %664 = vmatprep.subr.mxu0 0.0
    %665 = vmatpush1.msra.mxu0 0.0
    %666 = vmatprep.subr.mxu0 0.0
    %667 = vmatpush1.msra.mxu0 0.0
    %668 = vmatprep.subr.mxu0 0.0
    %669 = vmatpush1.msra.mxu0 0.0
    %670 = vmatprep.subr.mxu0 0.0
    %671 = vmatpush1.msra.mxu0 0.0
    %672 = vmatprep.subr.mxu0 0.0
    %673 = vmatpush1.msra.mxu0 0.0
    %674 = vmatprep.subr.mxu0 0.0
    %675 = vmatpush1.msra.mxu0 0.0
    %676 = vmatprep.subr.mxu0 0.0
    %677 = vmatpush1.msra.mxu0 0.0
    %678 = vmatprep.subr.mxu0 0.0
    %679 = vmatpush1.msra.mxu0 0.0
    %680 = vmatprep.subr.mxu0 0.0
    %681 = vmatpush1.msra.mxu0 0.0
    %682 = vmatprep.subr.mxu0 0.0
    %683 = vmatpush1.msra.mxu0 0.0
    %684 = vmatprep.subr.mxu0 0.0
    %685 = vmatpush1.msra.mxu0 0.0
    %686 = vmatprep.subr.mxu0 0.0
    %687 = vmatpush1.msra.mxu0 0.0
    %688 = vmatprep.subr.mxu0 0.0
    %689 = vmatpush1.msra.mxu0 0.0
    %690 = vmatprep.subr.mxu0 0.0
    %691 = vmatpush1.msra.mxu0 0.0
    %692 = vmatprep.mubr.f32.mxu0 0.0
    %693 = vmatmul.mubr.f32.gmra.mrb[0].mxu0 %v267
    %v694 = vpop.f32.mrb[0].mxu0
    %v695 = vadd.f32 0.0, %v694
    %v696 = vpop.f32.mrb[0].mxu0
    %697 = vdwg.mxu0
    %s698 = scalar_lea.vmem %s3, 40
    %699 = vst [vmem:[%s698] sm:$0x3f] %v695
    %700 = vmatprep.subr.mxu0 0.0
    %701 = vmatpush1.msra.mxu0 %v248
    %702 = vmatprep.subr.mxu0 0.0
    %703 = vmatpush1.msra.mxu0 %v253
    %704 = vmatprep.subr.mxu0 0.0
    %705 = vmatpush1.msra.mxu0 0.0
    %706 = vmatprep.subr.mxu0 0.0
    %707 = vmatpush1.msra.mxu0 0.0
    %708 = vmatprep.subr.mxu0 0.0
    %709 = vmatpush1.msra.mxu0 0.0
    %710 = vmatprep.subr.mxu0 0.0
    %711 = vmatpush1.msra.mxu0 0.0
    %712 = vmatprep.subr.mxu0 0.0
    %713 = vmatpush1.msra.mxu0 0.0
    %714 = vmatprep.subr.mxu0 0.0
    %715 = vmatpush1.msra.mxu0 0.0
    %716 = vmatprep.subr.mxu0 0.0
    %717 = vmatpush1.msra.mxu0 0.0
    %718 = vmatprep.subr.mxu0 0.0
    %719 = vmatpush1.msra.mxu0 0.0
    %720 = vmatprep.subr.mxu0 0.0
    %721 = vmatpush1.msra.mxu0 0.0
    %722 = vmatprep.subr.mxu0 0.0
    %723 = vmatpush1.msra.mxu0 0.0
    %724 = vmatprep.subr.mxu0 0.0
    %725 = vmatpush1.msra.mxu0 0.0
    %726 = vmatprep.subr.mxu0 0.0
    %727 = vmatpush1.msra.mxu0 0.0
    %728 = vmatprep.subr.mxu0 0.0
    %729 = vmatpush1.msra.mxu0 0.0
    %730 = vmatprep.subr.mxu0 0.0
    %731 = vmatpush1.msra.mxu0 0.0
    %732 = vmatprep.subr.mxu0 0.0
    %733 = vmatpush1.msra.mxu0 0.0
    %734 = vmatprep.subr.mxu0 0.0
    %735 = vmatpush1.msra.mxu0 0.0
    %736 = vmatprep.subr.mxu0 0.0
    %737 = vmatpush1.msra.mxu0 0.0
    %738 = vmatprep.subr.mxu0 0.0
    %739 = vmatpush1.msra.mxu0 0.0
    %740 = vmatprep.subr.mxu0 0.0
    %741 = vmatpush1.msra.mxu0 0.0
    %742 = vmatprep.subr.mxu0 0.0
    %743 = vmatpush1.msra.mxu0 0.0
    %744 = vmatprep.subr.mxu0 0.0
    %745 = vmatpush1.msra.mxu0 0.0
    %746 = vmatprep.subr.mxu0 0.0
    %747 = vmatpush1.msra.mxu0 0.0
    %748 = vmatprep.subr.mxu0 0.0
    %749 = vmatpush1.msra.mxu0 0.0
    %750 = vmatprep.subr.mxu0 0.0
    %751 = vmatpush1.msra.mxu0 0.0
    %752 = vmatprep.subr.mxu0 0.0
    %753 = vmatpush1.msra.mxu0 0.0
    %754 = vmatprep.subr.mxu0 0.0
    %755 = vmatpush1.msra.mxu0 0.0
    %756 = vmatprep.subr.mxu0 0.0
    %757 = vmatpush1.msra.mxu0 0.0
    %758 = vmatprep.subr.mxu0 0.0
    %759 = vmatpush1.msra.mxu0 0.0
    %760 = vmatprep.subr.mxu0 0.0
    %761 = vmatpush1.msra.mxu0 0.0
    %762 = vmatprep.subr.mxu0 0.0
    %763 = vmatpush1.msra.mxu0 0.0
    %764 = vmatprep.mubr.f32.mxu0 0.0
    %765 = vmatmul.mubr.f32.gmra.mrb[0].mxu0 %v267
    %v766 = vpop.f32.mrb[0].mxu0
    %v767 = vadd.f32 0.0, %v766
    %v768 = vpop.f32.mrb[0].mxu0
    %769 = vdwg.mxu0
    %s770 = scalar_lea.vmem %s3, 48
    %771 = vst [vmem:[%s770] sm:$0x3f] %v767
    %772 = vmatprep.subr.mxu0 0.0
    %773 = vmatpush1.msra.mxu0 %v258
    %774 = vmatprep.subr.mxu0 0.0
    %775 = vmatpush1.msra.mxu0 %v263
    %776 = vmatprep.subr.mxu0 0.0
    %777 = vmatpush1.msra.mxu0 0.0
    %778 = vmatprep.subr.mxu0 0.0
    %779 = vmatpush1.msra.mxu0 0.0
    %780 = vmatprep.subr.mxu0 0.0
    %781 = vmatpush1.msra.mxu0 0.0
    %782 = vmatprep.subr.mxu0 0.0
    %783 = vmatpush1.msra.mxu0 0.0
    %784 = vmatprep.subr.mxu0 0.0
    %785 = vmatpush1.msra.mxu0 0.0
    %786 = vmatprep.subr.mxu0 0.0
    %787 = vmatpush1.msra.mxu0 0.0
    %788 = vmatprep.subr.mxu0 0.0
    %789 = vmatpush1.msra.mxu0 0.0
    %790 = vmatprep.subr.mxu0 0.0
    %791 = vmatpush1.msra.mxu0 0.0
    %792 = vmatprep.subr.mxu0 0.0
    %793 = vmatpush1.msra.mxu0 0.0
    %794 = vmatprep.subr.mxu0 0.0
    %795 = vmatpush1.msra.mxu0 0.0
    %796 = vmatprep.subr.mxu0 0.0
    %797 = vmatpush1.msra.mxu0 0.0
    %798 = vmatprep.subr.mxu0 0.0
    %799 = vmatpush1.msra.mxu0 0.0
    %800 = vmatprep.subr.mxu0 0.0
    %801 = vmatpush1.msra.mxu0 0.0
    %802 = vmatprep.subr.mxu0 0.0
    %803 = vmatpush1.msra.mxu0 0.0
    %804 = vmatprep.subr.mxu0 0.0
    %805 = vmatpush1.msra.mxu0 0.0
    %806 = vmatprep.subr.mxu0 0.0
    %807 = vmatpush1.msra.mxu0 0.0
    %808 = vmatprep.subr.mxu0 0.0
    %809 = vmatpush1.msra.mxu0 0.0
    %810 = vmatprep.subr.mxu0 0.0
    %811 = vmatpush1.msra.mxu0 0.0
    %812 = vmatprep.subr.mxu0 0.0
    %813 = vmatpush1.msra.mxu0 0.0
    %814 = vmatprep.subr.mxu0 0.0
    %815 = vmatpush1.msra.mxu0 0.0
    %816 = vmatprep.subr.mxu0 0.0
    %817 = vmatpush1.msra.mxu0 0.0
    %818 = vmatprep.subr.mxu0 0.0
    %819 = vmatpush1.msra.mxu0 0.0
    %820 = vmatprep.subr.mxu0 0.0
    %821 = vmatpush1.msra.mxu0 0.0
    %822 = vmatprep.subr.mxu0 0.0
    %823 = vmatpush1.msra.mxu0 0.0
    %824 = vmatprep.subr.mxu0 0.0
    %825 = vmatpush1.msra.mxu0 0.0
    %826 = vmatprep.subr.mxu0 0.0
    %827 = vmatpush1.msra.mxu0 0.0
    %828 = vmatprep.subr.mxu0 0.0
    %829 = vmatpush1.msra.mxu0 0.0
    %830 = vmatprep.subr.mxu0 0.0
    %831 = vmatpush1.msra.mxu0 0.0
    %832 = vmatprep.subr.mxu0 0.0
    %833 = vmatpush1.msra.mxu0 0.0
    %834 = vmatprep.subr.mxu0 0.0
    %835 = vmatpush1.msra.mxu0 0.0
    %836 = vmatprep.mubr.f32.mxu0 0.0
    %837 = vmatmul.mubr.f32.gmra.mrb[0].mxu0 %v267
    %v838 = vpop.f32.mrb[0].mxu0
    %v839 = vadd.f32 0.0, %v838
    %v840 = vpop.f32.mrb[0].mxu0
    %841 = vdwg.mxu0
    %s842 = scalar_lea.vmem %s3, 56
    %843 = vst [vmem:[%s842] sm:$0x3f] %v839
    // Predicated region
    $region26: #{tpu_custom_call.1} parent=1 // pred_check
      _
    $region27: #{tpu_custom_call.1} parent=1 // pred_check_branch
      %845 = sbr.rel (0) target = $region29
    $region28: #{tpu_custom_call.1} parent=1 // pred_region
      _
    $region29: #{tpu_custom_call.1} parent=1 // pred_fallthru
      _
    // Predicated region
    $region30: #{tpu_custom_call.1} parent=1 // pred_check
      _
    $region31: #{tpu_custom_call.1} parent=1 // pred_check_branch
      %847 = sbr.rel (0) target = $region33
    $region32: #{tpu_custom_call.1} parent=1 // pred_region
      _
    $region33: #{tpu_custom_call.1} parent=1 // pred_fallthru
      _
    %848 = vsyncpa [#allocation3], 1
    %849 = vsyncpa [#allocation5], 1

</llo_original>
